<compile_context>
chip_gen: v6e
topology: v6e:2x2x1
jax: 0.10.0
libtpu: 0.0.40
codegen_flags: <defaults>
</compile_context>

<pallas_src>
import functools

import jax
import jax.numpy as jnp
from jax.experimental import pallas as pl
from jax.experimental.pallas import tpu as pltpu

LANES = 128
SUBLANES = 8


def _bce_tile_kernel(scalars_ref, logits_ref, targets_ref, out_ref, *,
                     tile_rows, valid_rows, needs_mask):
    """One (tile_rows, 128) block of temperature-scaled, label-smoothed BCE.

    Writes this tile's (8, 128) partial sum to its own output block.
    """
    inv_t = scalars_ref[0]          # 1 / temperature
    one_minus_ls = scalars_ref[1]   # 1 - label_smoothing
    ls = scalars_ref[2]             # label_smoothing

    x = logits_ref[...].astype(jnp.float32) * inv_t
    y = targets_ref[...].astype(jnp.float32) * one_minus_ls + ls

    # Numerically stable BCEWithLogits: max(x,0) - x*y + log(1 + exp(-|x|))
    loss = jnp.maximum(x, 0.0) - x * y + jnp.log1p(jnp.exp(-jnp.abs(x)))

    def partial_sum(v):
        # (tile_rows,128) -> (tile_rows/8, 8, 128) -> (8, 128): pure vreg adds.
        return v.reshape(tile_rows // SUBLANES, SUBLANES, LANES).sum(axis=0)

    if needs_mask:
        # Only the final (ragged) tile contains rows past the end of the
        # array; predicate the mask work so every other tile skips it.
        i = pl.program_id(0)
        is_last = i == pl.num_programs(0) - 1

        @pl.when(jnp.logical_not(is_last))
        def _():
            out_ref[...] = partial_sum(loss)

        @pl.when(is_last)
        def _():
            row = i * tile_rows + jax.lax.broadcasted_iota(
                jnp.int32, (tile_rows, LANES), 0)
            out_ref[...] = partial_sum(jnp.where(row < valid_rows, loss, 0.0))
    else:
        out_ref[...] = partial_sum(loss)


def _stable_bce_sum(x, y, inv_t, one_minus_ls, ls):
    """Plain-jnp BCE sum (used only for tiny tails / tiny inputs)."""
    x = x.astype(jnp.float32) * inv_t
    y = y.astype(jnp.float32) * one_minus_ls + ls
    return jnp.sum(jnp.maximum(x, 0.0) - x * y + jnp.log1p(jnp.exp(-jnp.abs(x))))


def temperature_scaled_bce_loss(logits, targets, temperature,
                                label_smoothing=0.1, tile_rows=4096):
    """mean(BCEWithLogits(logits / temperature, targets*(1-ls) + ls))."""
    assert logits.shape == targets.shape
    total = int(logits.size)

    inv_t = 1.0 / jnp.asarray(temperature, jnp.float32).reshape(())
    ls = jnp.asarray(label_smoothing, jnp.float32).reshape(())
    one_minus_ls = jnp.float32(1.0) - ls
    scalars = jnp.stack([inv_t, one_minus_ls, ls]).astype(jnp.float32)

    flat_logits = logits.reshape(-1)
    flat_targets = targets.reshape(-1)

    rows = total // LANES                 # number of complete 128-lane rows
    rem = total - rows * LANES            # elements in the partial last row

    # Tiny inputs (< 8 full lane-rows): a kernel launch is not worth it.
    if rows < SUBLANES:
        return _stable_bce_sum(flat_logits, flat_targets,
                               inv_t, one_minus_ls, ls) / jnp.float32(total)

    main_elems = rows * LANES
    if rem:
        # TODO(synk): this prefix slice materializes a copy of the main slab
        # when numel % 128 != 0; a zero-copy ragged path would need 1-D-block
        # DMA.  The common numel % 128 == 0 case below is copy-free.
        main_logits = flat_logits[:main_elems]
        main_targets = flat_targets[:main_elems]
    else:
        main_logits = flat_logits
        main_targets = flat_targets
    logits2d = main_logits.reshape(rows, LANES)
    targets2d = main_targets.reshape(rows, LANES)

    # Tile rows: multiple of 8, no larger than the slab, big by default so the
    # per-step overhead is amortized (2 MiB f32 per input block at 4096).
    tile_rows = int(tile_rows)
    tile_rows = max(SUBLANES, min(tile_rows - (tile_rows % SUBLANES),
                                  (rows // SUBLANES) * SUBLANES))
    num_tiles = -(-rows // tile_rows)
    needs_mask = (rows % tile_rows) != 0

    # Generation-aware VMEM cap (v7x has only 64 MiB per TensorCore).
    blk_bytes = tile_rows * LANES * (jnp.dtype(logits.dtype).itemsize +
                                     jnp.dtype(targets.dtype).itemsize)
    try:
        vmem_cap = int(pltpu.get_tpu_info().vmem_capacity_bytes)
    except Exception:
        vmem_cap = 64 * 1024 * 1024       # smallest (v7x) capacity as fallback
    vmem_limit = int(min((vmem_cap * 3) // 4,
                         max(32 * 1024 * 1024, 4 * blk_bytes)))

    kernel = functools.partial(_bce_tile_kernel, tile_rows=tile_rows,
                               valid_rows=rows, needs_mask=needs_mask)
    row_map = lambda i: (i, 0)

    partials = pl.pallas_call(
        kernel,
        out_shape=jax.ShapeDtypeStruct((num_tiles, SUBLANES, LANES),
                                       jnp.float32),
        grid_spec=pltpu.PrefetchScalarGridSpec(
            num_scalar_prefetch=0,
            grid=(num_tiles,),
            in_specs=[
                pl.BlockSpec(memory_space=pltpu.MemorySpace.SMEM),  # scalars
                pl.BlockSpec((tile_rows, LANES), row_map),          # logits
                pl.BlockSpec((tile_rows, LANES), row_map),          # targets
            ],
            # One (8,128) partial-sum block per tile (writes are negligible).
            out_specs=pl.BlockSpec((None, SUBLANES, LANES),
                                   lambda i: (i, 0, 0)),
        ),
        compiler_params=pltpu.CompilerParams(
            dimension_semantics=("parallel",),
            vmem_limit_bytes=vmem_limit),
    )(scalars, logits2d, targets2d)

    loss_sum = jnp.sum(partials)
    if rem:
        loss_sum = loss_sum + _stable_bce_sum(
            flat_logits[main_elems:], flat_targets[main_elems:],
            inv_t, one_minus_ls, ls)

    # Mean over the TRUE element count.
    return loss_sum / jnp.float32(total)


def reference_loss(logits, targets, temperature, label_smoothing=0.1):
    x = logits.astype(jnp.float32) / temperature
    y = targets.astype(jnp.float32) * (1.0 - label_smoothing) + label_smoothing
    loss = jnp.maximum(x, 0.0) - x * y + jnp.log1p(jnp.exp(-jnp.abs(x)))
    return jnp.mean(loss)


if __name__ == "__main__":
    key = jax.random.PRNGKey(0)
    k1, k2, k3, k4 = jax.random.split(key, 4)

    # Module __init__: temperature = ones(1) * 1.0, label_smoothing = 0.1
    initial_temperature = 1.0
    label_smoothing = 0.1

    # Example inputs (NCHW as PyTorch would pass them): [2, 4, 16, 16]
    logits = jax.random.normal(k1, (2, 4, 16, 16), dtype=jnp.float32)
    targets = (jax.random.uniform(k2, (2, 4, 16, 16)) > 0.5).astype(jnp.float32)

    loss = temperature_scaled_bce_loss(
        logits, targets, initial_temperature, label_smoothing)
    loss = jax.block_until_ready(loss)
    ref = reference_loss(logits, targets, initial_temperature, label_smoothing)
    assert jnp.allclose(loss, ref, rtol=1e-5, atol=1e-5), (loss, ref)

    # Element count NOT a multiple of 128: exercises the predicated ragged-tile
    # mask (rows=11, tile_rows=8, 2 tiles) plus the tiny plain-jnp tail.
    logits_b = jax.random.normal(k3, (2, 3, 15, 17), dtype=jnp.float32)
    targets_b = (jax.random.uniform(k4, (2, 3, 15, 17)) > 0.5).astype(jnp.float32)
    loss_b = temperature_scaled_bce_loss(
        logits_b, targets_b, 1.7, label_smoothing)
    loss_b = jax.block_until_ready(loss_b)
    ref_b = reference_loss(logits_b, targets_b, 1.7, label_smoothing)
    assert jnp.allclose(loss_b, ref_b, rtol=1e-5, atol=1e-5), (loss_b, ref_b)

    print("KERNEL_OK")
</pallas_src>

<mosaic_0001>
module attributes {stable_mosaic.version = 11 : i64} {
  func.func @_bce_tile_kernel(%arg0: i32, %arg1: memref<3xf32, #tpu.memory_space<smem>>, %arg2: memref<16x128xf32, #tpu.memory_space<vmem>>, %arg3: memref<16x128xf32, #tpu.memory_space<vmem>>, %arg4: memref<1x8x128xf32, #tpu.memory_space<vmem>>) attributes {dimension_semantics = [#tpu.dimension_semantics<parallel>], iteration_bounds = array<i64: 1>, scalar_prefetch = 0 : i64, scratch_operands = 0 : i64, tpu.core_type = #tpu.core_type<tc>, window_params = [{transform_indices = @transform_0, window_bounds = array<i64: 3>}, {transform_indices = @transform_1, window_bounds = array<i64: 16, 128>}, {transform_indices = @transform_2, window_bounds = array<i64: 16, 128>}, {transform_indices = @transform_3, window_bounds = array<i64: 1, 8, 128>}]} {
    %c0 = arith.constant 0 : index
    %0 = memref.load %arg1[%c0] : memref<3xf32, #tpu.memory_space<smem>>
    %c1 = arith.constant 1 : index
    %1 = memref.load %arg1[%c1] : memref<3xf32, #tpu.memory_space<smem>>
    %c2 = arith.constant 2 : index
    %2 = memref.load %arg1[%c2] : memref<3xf32, #tpu.memory_space<smem>>
    %c0_0 = arith.constant 0 : index
    %c0_1 = arith.constant 0 : index
    %3 = vector.load %arg2[%c0_0, %c0_1] : memref<16x128xf32, #tpu.memory_space<vmem>>, vector<16x128xf32>
    %4 = vector.broadcast %0 : f32 to vector<16x128xf32>
    %5 = arith.mulf %3, %4 : vector<16x128xf32>
    %c0_2 = arith.constant 0 : index
    %c0_3 = arith.constant 0 : index
    %6 = vector.load %arg3[%c0_2, %c0_3] : memref<16x128xf32, #tpu.memory_space<vmem>>, vector<16x128xf32>
    %7 = vector.broadcast %1 : f32 to vector<16x128xf32>
    %8 = arith.mulf %6, %7 : vector<16x128xf32>
    %9 = vector.broadcast %2 : f32 to vector<16x128xf32>
    %10 = arith.addf %8, %9 : vector<16x128xf32>
    %cst = arith.constant 0.000000e+00 : f32
    %11 = vector.broadcast %cst : f32 to vector<16x128xf32>
    %12 = arith.maximumf %5, %11 : vector<16x128xf32>
    %13 = arith.mulf %5, %10 : vector<16x128xf32>
    %14 = arith.subf %12, %13 : vector<16x128xf32>
    %15 = math.absf %5 : vector<16x128xf32>
    %cst_4 = arith.constant 0.000000e+00 : f32
    %16 = vector.broadcast %cst_4 : f32 to vector<16x128xf32>
    %17 = arith.subf %16, %15 : vector<16x128xf32>
    %18 = math.exp %17 : vector<16x128xf32>
    %19 = math.log1p %18 : vector<16x128xf32>
    %20 = arith.addf %14, %19 : vector<16x128xf32>
    %21 = vector.shape_cast %20 : vector<16x128xf32> to vector<2x8x128xf32>
    %cst_5 = arith.constant dense<0.000000e+00> : vector<8x128xf32>
    %22 = vector.multi_reduction <add>, %21, %cst_5 [0] : vector<2x8x128xf32> to vector<8x128xf32>
    %c0_6 = arith.constant 0 : index
    %c0_7 = arith.constant 0 : index
    %c0_8 = arith.constant 0 : index
    %23 = vector.load %arg4[%c0_6, %c0_7, %c0_8] : memref<1x8x128xf32, #tpu.memory_space<vmem>>, vector<1x8x128xf32>
    %24 = vector.shape_cast %23 : vector<1x8x128xf32> to vector<8x128xf32>
    %25 = vector.shape_cast %22 : vector<8x128xf32> to vector<1x8x128xf32>
    tpu.vector_store %arg4[%c0_6, %c0_7, %c0_8], %25 {strides = array<i32>} : memref<1x8x128xf32, #tpu.memory_space<vmem>>, vector<1x8x128xf32>,
    return
  }
  func.func @transform_0(%arg0: i32) -> i32 {
    %c0_i32 = arith.constant 0 : i32
    %c0_i32_0 = arith.constant 0 : i32
    return %c0_i32 : i32
  }
  func.func @transform_1(%arg0: i32) -> (i32, i32) {
    %c0_i32 = arith.constant 0 : i32
    %c0_i32_0 = arith.constant 0 : i32
    return %arg0, %c0_i32 : i32, i32
  }
  func.func @transform_2(%arg0: i32) -> (i32, i32) {
    %c0_i32 = arith.constant 0 : i32
    %c0_i32_0 = arith.constant 0 : i32
    return %arg0, %c0_i32 : i32, i32
  }
  func.func @transform_3(%arg0: i32) -> (i32, i32, i32) {
    %c0_i32 = arith.constant 0 : i32
    %c0_i32_0 = arith.constant 0 : i32
    %c0_i32_1 = arith.constant 0 : i32
    return %arg0, %c0_i32, %c0_i32_0 : i32, i32, i32
  }
}

</mosaic_0001>

<llo_original>
// kernel: tpu_custom_call.1
$region0: #{tpu_custom_call.1}
  #allocation0 [shape = 'u32[]', space=smem, size = 0x4, offset = 0x4, fixed_abs, tag = 'smem constant byte address 0x4 - core index']
  #allocation1 [shape = 'u32[144,128]{1,0:T(1,128)}', space=vmem, size = 0x12000, scoped, tag = 'internal scratch']
  %s0 = inlined_call_operand.hbm [shape: f32[3], index: 0, kind: input, shape index: {}]
  %s1 = inlined_call_operand.hbm [shape: f32[16,128], index: 1, kind: input, shape index: {}]
  %s2 = inlined_call_operand.hbm [shape: f32[16,128], index: 2, kind: input, shape index: {}]
  %s3 = inlined_call_operand.hbm [shape: f32[1,8,128], index: 3, kind: output, shape index: {}]
  %s4 = sld [smem:[#allocation0]]
  $region34: #{tpu_custom_call.1} parent=0
    _
  %s6 = ssub.s32 1, %s4
  %s7 = scalar_select 0, %s6, %s4
  $region1: #{tpu_custom_call.1} parent=0
    #allocation2 [shape = 'u8[512]{0}', space=smem, size = 0x200, scoped, tag = 'input window, operand 0, single buffered']
    #allocation3 [shape = 's32[1]{0}', space=sflag, size = 0x4, scoped, tag = 'scoped memory for tpu_custom_call.1']
    #allocation4 [shape = 's32[1]{0}', space=sflag, size = 0x4, scoped, tag = 'scoped memory for tpu_custom_call.1']
    #allocation5 [shape = 's32[1]{0}', space=sflag, size = 0x4, scoped, tag = 'scoped memory for tpu_custom_call.1']
    #allocation6 [shape = 'u8[8192]{0}', space=vmem, size = 0x2000, scoped, tag = 'input window, operand 1, single buffered']
    #allocation7 [shape = 'u8[8192]{0}', space=vmem, size = 0x2000, scoped, tag = 'input window, operand 2, single buffered']
    #allocation8 [shape = 's32[1]{0}', space=sflag, size = 0x4, scoped, tag = 'scoped memory for tpu_custom_call.1']
    #allocation9 [shape = 'u8[4096]{0}', space=vmem, size = 0x1000, scoped, tag = 'output window, operand 0, single buffered']
    %8 = vsyncpa [#allocation5], 0
    %9 = vsyncpa [#allocation3], 0
    %10 = vsyncpa [#allocation8], 0
    %11 = vsyncpa [#allocation4], 0
    // Predicated region
    $region2: #{tpu_custom_call.1} parent=1 // pred_check
      _
    $region3: #{tpu_custom_call.1} parent=1 // pred_check_branch
      %13 = sbr.rel (0) target = $region5
    $region4: #{tpu_custom_call.1} parent=1 // pred_region
      %s15 = ssub.s32 16, 16
      %16 = vsyncadd [#allocation5], %s15
      %19 = dma.hbm_to_smem %s0, 16, [#allocation2], [#allocation5]
    $region5: #{tpu_custom_call.1} parent=1 // pred_fallthru
      _
    // Predicated region
    $region6: #{tpu_custom_call.1} parent=1 // pred_check
      _
    $region7: #{tpu_custom_call.1} parent=1 // pred_check_branch
      %21 = sbr.rel (0) target = $region9
    $region8: #{tpu_custom_call.1} parent=1 // pred_region
      %s23 = ssub.s32 256, 256
      %24 = vsyncadd [#allocation3], %s23
      %s25 = sshll.u32 [#allocation6], 4
      %s26 = int_to_ptr.vmem [resolvable:$true] %s25
      %31 = dma.hbm_to_vmem [thread:$0]  %s1, 256, %s26, [#allocation3], 128, 128, 8
    $region9: #{tpu_custom_call.1} parent=1 // pred_fallthru
      _
    // Predicated region
    $region10: #{tpu_custom_call.1} parent=1 // pred_check
      _
    $region11: #{tpu_custom_call.1} parent=1 // pred_check_branch
      %33 = sbr.rel (0) target = $region13
    $region12: #{tpu_custom_call.1} parent=1 // pred_region
      %s35 = ssub.s32 256, 256
      %36 = vsyncadd [#allocation8], %s35
      %s37 = sshll.u32 [#allocation7], 4
      %s38 = int_to_ptr.vmem [resolvable:$true] %s37
      %43 = dma.hbm_to_vmem [thread:$0]  %s2, 256, %s38, [#allocation8], 128, 128, 8
    $region13: #{tpu_custom_call.1} parent=1 // pred_fallthru
      _
    // Predicated region
    $region14: #{tpu_custom_call.1} parent=1 // pred_check
      _
    $region15: #{tpu_custom_call.1} parent=1 // pred_check_branch
      %45 = sbr.rel (0) target = $region17
    $region16: #{tpu_custom_call.1} parent=1 // pred_region
      %46 = dma.done [#allocation5], 16
    $region17: #{tpu_custom_call.1} parent=1 // pred_fallthru
      _
    // Predicated region
    $region18: #{tpu_custom_call.1} parent=1 // pred_check
      _
    $region19: #{tpu_custom_call.1} parent=1 // pred_check_branch
      %48 = sbr.rel (0) target = $region21
    $region20: #{tpu_custom_call.1} parent=1 // pred_region
      %49 = dma.done [#allocation3], 256
    $region21: #{tpu_custom_call.1} parent=1 // pred_fallthru
      _
    // Predicated region
    $region22: #{tpu_custom_call.1} parent=1 // pred_check
      _
    $region23: #{tpu_custom_call.1} parent=1 // pred_check_branch
      %51 = sbr.rel (0) target = $region25
    $region24: #{tpu_custom_call.1} parent=1 // pred_region
      %52 = dma.done [#allocation8], 256
    $region25: #{tpu_custom_call.1} parent=1 // pred_fallthru
      _
    %53 = sfence
    %s54 = sld [smem:[#allocation2]]
    %s55 = sld [smem:[#allocation2 + $0x1]]
    %s56 = sld [smem:[#allocation2 + $0x2]]
    %v57 = vld [vmem:[#allocation6] sm:$0xff]
    %v58 = vld [vmem:[#allocation6 + $0x8] sm:$0xff]
    %v59 = vstv %s54
    %v60 = vmul.f32 %v57, %v59
    %v61 = vmul.f32 %v58, %v59
    %v62 = vld [vmem:[#allocation7] sm:$0xff]
    %v63 = vld [vmem:[#allocation7 + $0x8] sm:$0xff]
    %v64 = vstv %s55
    %v65 = vmul.f32 %v62, %v64
    %v66 = vmul.f32 %v63, %v64
    %v67 = vstv %s56
    %v68 = vadd.f32 %v65, %v67
    %v69 = vadd.f32 %v66, %v67
    %v70 = vmax.f32 %v60, 0.0
    %v71 = vmax.f32 %v61, 0.0
    %v72 = vmul.f32 %v60, %v68
    %v73 = vmul.f32 %v61, %v69
    %v74 = vsub.f32 %v70, %v72
    %v75 = vsub.f32 %v71, %v73
    %v76 = vand.u32 2147483647, %v60
    %v77 = vand.u32 2147483647, %v61
    %v78 = vsub.f32 0.0, %v76
    %v79 = vsub.f32 0.0, %v77
    %v80 = vmul.f32 %v78, 1.442695
    %v81 = vpow.pop %v80
    %v82 = vmul.f32 %v79, 1.442695
    %v83 = vpow.pop %v82
    %v84 = vadd.f32 %v81, 1.0
    %v85 = vlog2.pop %v84
    %v86 = vmul.f32 %v85, 0.6931472
    %v87 = vmul.f32 -0.5, %v81
    %v88 = vadd.f32 %v87, 1.0
    %v89 = vmul.f32 %v88, %v81
    %v90 = vand.u32 2147483647, %v81
    %vm91 = vcmp.lt.f32.partialorder %v90, 0.0004427343
    %v92 = vsel %vm91, %v89, %v86
    %v93 = vadd.f32 %v83, 1.0
    %v94 = vlog2.pop %v93
    %v95 = vmul.f32 %v94, 0.6931472
    %v96 = vmul.f32 -0.5, %v83
    %v97 = vadd.f32 %v96, 1.0
    %v98 = vmul.f32 %v97, %v83
    %v99 = vand.u32 2147483647, %v83
    %vm100 = vcmp.lt.f32.partialorder %v99, 0.0004427343
    %v101 = vsel %vm100, %v98, %v95
    %v102 = vadd.f32 %v74, %v92
    %v103 = vadd.f32 %v75, %v101
    %v104 = vadd.f32 %v102, %v103
    %105 = vst [vmem:[#allocation9] sm:$0xff] %v104
    // Predicated region
    $region26: #{tpu_custom_call.1} parent=1 // pred_check
      _
    $region27: #{tpu_custom_call.1} parent=1 // pred_check_branch
      %107 = sbr.rel (0) target = $region29
    $region28: #{tpu_custom_call.1} parent=1 // pred_region
      %s109 = ssub.s32 128, 128
      %110 = vsyncadd [#allocation4], %s109
      %s112 = sshll.u32 [#allocation9], 4
      %s113 = int_to_ptr.vmem [resolvable:$true] %s112
      %115 = dma.vmem_to_hbm [thread:$0]  %s113, 128, %s3, [#allocation4]
    $region29: #{tpu_custom_call.1} parent=1 // pred_fallthru
      _
    // Predicated region
    $region30: #{tpu_custom_call.1} parent=1 // pred_check
      _
    $region31: #{tpu_custom_call.1} parent=1 // pred_check_branch
      %117 = sbr.rel (0) target = $region33
    $region32: #{tpu_custom_call.1} parent=1 // pred_region
      %118 = dma.done [#allocation4], 128
    $region33: #{tpu_custom_call.1} parent=1 // pred_fallthru
      _
    %119 = vsyncpa [#allocation3], 1
    %120 = vsyncpa [#allocation8], 1
    %121 = vsyncpa [#allocation4], 1
    %122 = vsyncpa [#allocation5], 1

</llo_original>
